<compile_context>
chip_gen: v7x
topology: tpu7x:2x2x1
jax: 0.10.0
libtpu: 0.0.40
codegen_flags: <defaults>
</compile_context>

<pallas_src>
import jax
import jax.numpy as jnp
from jax.experimental import pallas as pl
from jax.experimental.pallas import tpu as pltpu


def _h_swish_kernel(x_ref, o_ref):
    x = x_ref[...]
    # h_swish(x) = x * relu6(x + 3) / 6 ; relu6(z) = clip(z, 0, 6)
    # Keep the divide: the op is HBM-bound, VPU slack makes it free, and it
    # mirrors the PyTorch module's `/ 6` literally.
    o_ref[...] = (x * jnp.clip(x + 3.0, 0.0, 6.0) / 6.0).astype(o_ref.dtype)


_LANE_CANDIDATES = (8192, 4096, 2048, 1024, 512, 384, 256, 128)


def _chip_defaults():
    """(target_block_bytes, vmem_limit_bytes) tuned per TPU generation."""
    kind = ""
    try:
        kind = jax.devices()[0].device_kind.lower()
    except Exception:
        pass
    if ("v5 lite" in kind) or ("v5e" in kind) or ("v5lite" in kind):
        # ~820 GB/s HBM: 2-3 MiB blocks already amortize the ~0.35 us/step cost.
        return 3 * 1024 * 1024, 32 << 20
    if "v7" in kind:
        # 3.2 TB/s HBM, 64 MiB physical VMEM: grow blocks and set the limit
        # explicitly (4 x 8 MiB double-buffered in+out = 32 MiB, headroom left).
        return 8 * 1024 * 1024, 48 << 20
    # v6e / unknown: 1.4 TB/s HBM, 128 MiB physical VMEM.
    return 6 * 1024 * 1024, 48 << 20


def _launch(x2d, block_shape, index_map, grid, vmem_limit, total, itemsize):
    return pl.pallas_call(
        _h_swish_kernel,
        out_shape=jax.ShapeDtypeStruct(x2d.shape, x2d.dtype),
        grid_spec=pltpu.PrefetchScalarGridSpec(
            num_scalar_prefetch=0,
            grid=grid,
            in_specs=[pl.BlockSpec(block_shape, index_map)],
            out_specs=pl.BlockSpec(block_shape, index_map),
        ),
        compiler_params=pltpu.CompilerParams(
            dimension_semantics=("parallel",),
            vmem_limit_bytes=vmem_limit,
        ),
        cost_estimate=pl.CostEstimate(
            flops=5 * total,
            transcendentals=0,
            bytes_accessed=2 * total * itemsize,
        ),
    )(x2d)


def h_swish(x: jax.Array, *, target_block_bytes: int | None = None,
            vmem_limit_bytes: int | None = None) -> jax.Array:
    """Hard-swish, exact semantics of the PyTorch h_swish module."""
    orig_shape = x.shape
    orig_dtype = x.dtype
    total = x.size
    if total == 0:
        return x

    tb_default, vmem_default = _chip_defaults()
    target_block_bytes = target_block_bytes or tb_default
    vmem_limit_bytes = vmem_limit_bytes or vmem_default

    itemsize = jnp.dtype(orig_dtype).itemsize
    # Packed sublane granularity: 8 (f32), 16 (bf16), 32 (int8/fp8).
    # bf16 inputs stay bf16 in-kernel (no wrapper upcast: that would double
    # HBM bytes; any implicit VALU widening is free under the HBM roofline).
    sublane = max(8, 32 // itemsize)

    # Widest lane-dense slab width that divides the flat length -> no padding.
    lanes = None
    for cand in _LANE_CANDIDATES:
        if total % cand == 0:
            lanes = cand
            break

    x_flat = x.reshape(-1)

    if lanes is None:
        # Rare fallback: flat size not a multiple of 128.  Instead of
        # jnp.pad + trailing slice (two extra full HBM passes), view the data
        # as (1, total) and let Pallas' masked edge DMA handle the ragged tail
        # of the last lane block.  Blocks stay modest because (1, N) VMEM
        # buffers may be sublane-padded; the path is rare, so roofline slack
        # here is acceptable.
        x2d = x_flat.reshape(1, total)
        block_lanes = 64 * 1024
        if block_lanes > total:
            block_lanes = ((total + 127) // 128) * 128   # single ragged block
        grid = (pl.cdiv(total, block_lanes),)
        out2d = _launch(x2d, (1, block_lanes), lambda i: (0, i), grid,
                        vmem_limit_bytes, total, itemsize)
        return out2d.reshape(orig_shape)

    # Common path: lane-dense (rows, lanes) slab, ~target_block_bytes blocks of
    # whole rows; pl.cdiv grid so a ragged last block is masked by Pallas.
    rows = total // lanes
    x2d = x_flat.reshape(rows, lanes)

    block_rows = max(1, target_block_bytes // (lanes * itemsize))
    if block_rows >= rows:
        # Never collapse the grid to one step when it can be split: the
        # "parallel" axis only shards across v7x's two TensorCores with >= 2
        # blocks.
        if rows > sublane:
            half = (rows + 1) // 2
            block_rows = ((half + sublane - 1) // sublane) * sublane
        else:
            block_rows = rows      # block == full row extent (always legal)
    else:
        block_rows = max(sublane, (block_rows // sublane) * sublane)
    grid = (pl.cdiv(rows, block_rows),)

    out2d = _launch(x2d, (block_rows, lanes), lambda i: (i, 0), grid,
                    vmem_limit_bytes, total, itemsize)
    return out2d.reshape(orig_shape)


if __name__ == "__main__":
    def ref_fn(v):
        return v * jnp.clip(v + 3.0, 0.0, 6.0) / 6.0

    key = jax.random.PRNGKey(0)
    k1, k2, k3 = jax.random.split(key, 3)

    # NCHW activation on the common (128-divisible) path, single-row slab.
    x1 = jax.random.normal(k1, (2, 4, 16, 16), dtype=jnp.float32) * 4.0
    y1 = jax.block_until_ready(h_swish(x1))
    assert y1.shape == x1.shape and y1.dtype == x1.dtype
    assert jnp.allclose(y1, ref_fn(x1), atol=1e-6, rtol=1e-6)

    # Bigger slab: exercises the >=2-block grid split (two-TensorCore path).
    x2 = jax.random.normal(k2, (2, 16, 32, 128), dtype=jnp.float32) * 4.0
    y2 = jax.block_until_ready(h_swish(x2))
    assert jnp.allclose(y2, ref_fn(x2), atol=1e-6, rtol=1e-6)

    # Non-128-divisible flat size: exercises the ragged (1, total) fallback
    # (no pad copy, no trailing slice).
    x3 = jax.random.normal(k3, (3, 5, 7), dtype=jnp.float32) * 4.0
    y3 = jax.block_until_ready(h_swish(x3))
    assert jnp.allclose(y3, ref_fn(x3), atol=1e-6, rtol=1e-6)

    print("KERNEL_OK")
</pallas_src>

<mosaic_0001>
module attributes {stable_mosaic.version = 11 : i64} {
  func.func @_h_swish_kernel(%arg0: i32, %arg1: memref<1x2048xf32, #tpu.memory_space<vmem>>, %arg2: memref<1x2048xf32, #tpu.memory_space<vmem>>) attributes {dimension_semantics = [#tpu.dimension_semantics<parallel>], iteration_bounds = array<i64: 1>, scalar_prefetch = 0 : i64, scratch_operands = 0 : i64, tpu.core_type = #tpu.core_type<tc>, window_params = [{transform_indices = @transform_0, window_bounds = array<i64: 1, 2048>}, {transform_indices = @transform_1, window_bounds = array<i64: 1, 2048>}]} {
    %c0 = arith.constant 0 : index
    %c0_0 = arith.constant 0 : index
    %0 = vector.load %arg1[%c0, %c0_0] : memref<1x2048xf32, #tpu.memory_space<vmem>>, vector<1x2048xf32>
    %cst = arith.constant 3.000000e+00 : f32
    %1 = vector.broadcast %cst : f32 to vector<1x2048xf32>
    %2 = arith.addf %0, %1 : vector<1x2048xf32>
    %cst_1 = arith.constant 0.000000e+00 : f32
    %cst_2 = arith.constant 6.000000e+00 : f32
    %3 = vector.broadcast %cst_1 : f32 to vector<1x2048xf32>
    %4 = arith.maximumf %3, %2 : vector<1x2048xf32>
    %5 = vector.broadcast %cst_2 : f32 to vector<1x2048xf32>
    %6 = arith.minimumf %5, %4 : vector<1x2048xf32>
    %7 = arith.mulf %0, %6 : vector<1x2048xf32>
    %cst_3 = arith.constant 6.000000e+00 : f32
    %8 = vector.broadcast %cst_3 : f32 to vector<1x2048xf32>
    %9 = arith.divf %7, %8 : vector<1x2048xf32>
    %c0_4 = arith.constant 0 : index
    %c0_5 = arith.constant 0 : index
    %10 = vector.load %arg2[%c0_4, %c0_5] : memref<1x2048xf32, #tpu.memory_space<vmem>>, vector<1x2048xf32>
    tpu.vector_store %arg2[%c0_4, %c0_5], %9 {strides = array<i32>} : memref<1x2048xf32, #tpu.memory_space<vmem>>, vector<1x2048xf32>,
    return
  }
  func.func @transform_0(%arg0: i32) -> (i32, i32) {
    %c0_i32 = arith.constant 0 : i32
    %c0_i32_0 = arith.constant 0 : i32
    return %arg0, %c0_i32 : i32, i32
  }
  func.func @transform_1(%arg0: i32) -> (i32, i32) {
    %c0_i32 = arith.constant 0 : i32
    %c0_i32_0 = arith.constant 0 : i32
    return %arg0, %c0_i32 : i32, i32
  }
}

</mosaic_0001>

<llo_original>
// kernel: tpu_custom_call.1
$region0: #{tpu_custom_call.1}
  #allocation0 [shape = 'u32[]', space=smem, size = 0x4, offset = 0x4, fixed_abs, tag = 'smem constant byte address 0x4 - core index']
  #allocation1 [shape = 'u32[144,128]{1,0:T(1,128)}', space=vmem, size = 0x12000, scoped, tag = 'internal scratch']
  %s0 = inlined_call_operand.hbm [shape: f32[1,2048], index: 0, kind: input, shape index: {}]
  %s1 = inlined_call_operand.hbm [shape: f32[1,2048], index: 1, kind: output, shape index: {}]
  %s2 = sld [smem:[#allocation0]]
  $region18: #{tpu_custom_call.1} parent=0
    _
  %s4 = ssub.s32 1, %s2
  %s5 = scalar_select 0, %s4, %s2
  $region1: #{tpu_custom_call.1} parent=0
    #allocation2 [shape = 'u8[8192]{0}', space=vmem, size = 0x2000, scoped, tag = 'input window, operand 0, single buffered']
    #allocation3 [shape = 's32[1]{0}', space=sflag, size = 0x4, scoped, tag = 'scoped memory for tpu_custom_call.1']
    #allocation4 [shape = 's32[1]{0}', space=sflag, size = 0x4, scoped, tag = 'scoped memory for tpu_custom_call.1']
    #allocation5 [shape = 'u8[8192]{0}', space=vmem, size = 0x2000, scoped, tag = 'output window, operand 0, single buffered']
    %6 = vsyncpa [#allocation3], 0
    %7 = vsyncpa [#allocation4], 0
    // Predicated region
    $region2: #{tpu_custom_call.1} parent=1 // pred_check
      _
    $region3: #{tpu_custom_call.1} parent=1 // pred_check_branch
      %9 = sbr.rel (0) target = $region5
    $region4: #{tpu_custom_call.1} parent=1 // pred_region
      %s11 = ssub.s32 256, 256
      %12 = vsyncadd [#allocation3], %s11
      %s14 = sshll.u32 [#allocation2], 4
      %s15 = int_to_ptr.vmem [resolvable:$true] %s14
      %17 = dma.hbm_to_vmem [thread:$0]  %s0, 256, %s15, [#allocation3]
    $region5: #{tpu_custom_call.1} parent=1 // pred_fallthru
      _
    // Predicated region
    $region6: #{tpu_custom_call.1} parent=1 // pred_check
      _
    $region7: #{tpu_custom_call.1} parent=1 // pred_check_branch
      %19 = sbr.rel (0) target = $region9
    $region8: #{tpu_custom_call.1} parent=1 // pred_region
      %20 = dma.done [#allocation3], 256
    $region9: #{tpu_custom_call.1} parent=1 // pred_fallthru
      _
    %v21 = vld [vmem:[#allocation2] sm:$0xff]
    %v22 = vld [vmem:[#allocation2 + $0x8] sm:$0xff]
    %v23 = vadd.f32 %v21, 3.0
    %v24 = vadd.f32 %v22, 3.0
    %v25 = vmax.f32 %v23, 0.0
    %v26 = vmax.f32 %v24, 0.0
    %v27 = vmin.f32 %v25, 6.0
    %v28 = vmin.f32 %v26, 6.0
    %v29 = vmul.f32 %v21, %v27
    %v30 = vmul.f32 %v22, %v28
    %v31 = vrcp.pop 6.0
    %v32 = vmul.f32 %v29, %v31
    %v33 = vmul.f32 %v30, %v31
    %34 = vst [vmem:[#allocation5] sm:$0xff] %v32
    %35 = vst [vmem:[#allocation5 + $0x8] sm:$0xff] %v33
    // Predicated region
    $region10: #{tpu_custom_call.1} parent=1 // pred_check
      _
    $region11: #{tpu_custom_call.1} parent=1 // pred_check_branch
      %37 = sbr.rel (0) target = $region13
    $region12: #{tpu_custom_call.1} parent=1 // pred_region
      %s39 = ssub.s32 256, 256
      %40 = vsyncadd [#allocation4], %s39
      %s42 = sshll.u32 [#allocation5], 4
      %s43 = int_to_ptr.vmem [resolvable:$true] %s42
      %45 = dma.vmem_to_hbm [thread:$0]  %s43, 256, %s1, [#allocation4]
    $region13: #{tpu_custom_call.1} parent=1 // pred_fallthru
      _
    // Predicated region
    $region14: #{tpu_custom_call.1} parent=1 // pred_check
      _
    $region15: #{tpu_custom_call.1} parent=1 // pred_check_branch
      %47 = sbr.rel (0) target = $region17
    $region16: #{tpu_custom_call.1} parent=1 // pred_region
      %48 = dma.done [#allocation4], 256
    $region17: #{tpu_custom_call.1} parent=1 // pred_fallthru
      _
    %49 = vsyncpa [#allocation3], 1
    %50 = vsyncpa [#allocation4], 1

</llo_original>
